<compile_context>
chip_gen: v7x
topology: tpu7x:2x2x1
jax: 0.10.0
libtpu: 0.0.40
codegen_flags: <defaults>
</compile_context>

<pallas_src>
import sys
import functools

import jax
import jax.numpy as jnp
import numpy as np
from jax import lax
from jax.experimental import pallas as pl
from jax.experimental.pallas import tpu as pltpu

EPS = sys.float_info.epsilon          # 2.220446049250313e-16 (matches PyTorch)
_FASTPATH_BYTES = 256 * 1024          # below this total size, plain jnp wins
_MAX_TILE_ROWS = 1024                 # 512-1024 row tiles already ~85% of HBM roofline
_VMEM_LIMIT = 48 * 1024 * 1024        # <= 64 MiB physical VMEM on v7x


def _cdiv(a, b):
    return -(-a // b)


def _round_up(a, b):
    return _cdiv(a, b) * b


def _attention_loss_kernel(*refs, num_head, rows, tile, tiles_per_split,
                           may_need_mask):
    """Accumulates N * sum_i (x_i - mean)^2 over the row-tiles owned by one core."""
    x_refs = refs[:num_head]          # each (tile, 128), HBM dtype (cast in-kernel)
    o_ref = refs[num_head]            # (1, 8, 128) f32: this core's partial sums
    acc_ref = refs[num_head + 1]      # (8, 128) f32 accumulator (scratch)

    c = pl.program_id(0)              # core-split axis ("parallel", v7x 2 TCs)
    r = pl.program_id(1)              # row-tile axis within the split ("arbitrary")

    @pl.when(r == 0)
    def _init():
        acc_ref[...] = jnp.zeros_like(acc_ref)

    # Pass 1: per-element sum over heads -> mean (heads are VMEM-resident).
    s = x_refs[0][...].astype(jnp.float32)
    for h in range(1, num_head):                     # static unroll
        s = s + x_refs[h][...].astype(jnp.float32)
    mean = s * jnp.float32(1.0 / num_head)

    # Pass 2: centered sum of squares (numerically stable; re-reads VMEM only).
    d = x_refs[0][...].astype(jnp.float32) - mean
    css = d * d
    for h in range(1, num_head):
        d = x_refs[h][...].astype(jnp.float32) - mean
        css = css + d * d
    contrib = jnp.float32(num_head) * css            # (tile, 128)

    groups = tile // 8

    def _fold(v):
        # (tile,128) -> (8,128) via sublane-group adds: static vreg-aligned
        # slices, pure VALU, no reshape / no XLU.
        out = v[0:8, :]
        for g in range(1, groups):
            out = out + v[g * 8:(g + 1) * 8, :]
        return out

    if may_need_mask:
        gstart = (c * tiles_per_split + r) * tile    # global start row of tile
        fully_in = gstart + tile <= rows

        @pl.when(fully_in)                           # mask only the ragged tiles
        def _accum_unmasked():
            acc_ref[...] = acc_ref[...] + _fold(contrib)

        @pl.when(jnp.logical_not(fully_in))
        def _accum_masked():
            gid = gstart + lax.broadcasted_iota(jnp.int32, (tile, 128), 0)
            masked = jnp.where(gid < rows, contrib, jnp.float32(0.0))
            acc_ref[...] = acc_ref[...] + _fold(masked)
    else:
        acc_ref[...] = acc_ref[...] + _fold(contrib)

    @pl.when(r == tiles_per_split - 1)
    def _finalize():
        o_ref[0] = acc_ref[...]


def _pick_tiling(rows, num_head, itemsize, max_tile_rows=None):
    """Returns (row-tile, num core-splits, tiles per split)."""
    sub = {4: 8, 2: 16, 1: 32}.get(itemsize, 8)      # sublane alignment by dtype
    if max_tile_rows is not None:
        cap = max(32, (int(max_tile_rows) // 32) * 32)
    else:
        # Honest per-row VMEM bytes: 2 pipeline buffers per input head plus
        # ~8 tile-sized f32 elementwise temporaries (s/mean/d/css/contrib/iota).
        budget = 20 * 1024 * 1024
        per_row = 128 * (2 * num_head * itemsize + 8 * 4)
        cap = budget // per_row
        cap = int(min(_MAX_TILE_ROWS, max(64, (cap // 32) * 32)))
    tile = min(cap, _round_up(rows, sub))            # never (much) bigger than data
    total_tiles = _cdiv(rows, tile)
    num_splits = 2 if total_tiles >= 2 else 1        # 2 TCs on v7x; harmless on v5e/v6e
    tiles_per_split = _cdiv(total_tiles, num_splits)
    return tile, num_splits, tiles_per_split


def _attention_loss_jnp(heads):
    """Tiny-input fast path (same centered identity, pure jnp)."""
    num_head = len(heads)
    x = jnp.stack([jnp.ravel(h) for h in heads]).astype(jnp.float32)
    mean = jnp.mean(x, axis=0, keepdims=True)
    total = jnp.float32(num_head) * jnp.sum((x - mean) ** 2)
    mse_sum = total / jnp.float32(x.shape[1])
    count = num_head * (num_head - 1) // 2
    return jnp.float32(count) / (mse_sum + jnp.float32(EPS))


def attention_loss(heads, *, max_tile_rows=None, use_fastpath=True):
    """heads: list of same-shaped arrays (any rank). Returns scalar f32 loss."""
    num_head = len(heads)
    if num_head <= 1:
        return jnp.float32(0.0)

    n_elems = int(np.prod(heads[0].shape))
    itemsize = jnp.dtype(heads[0].dtype).itemsize
    count = num_head * (num_head - 1) // 2

    body_elems = (n_elems // 128) * 128
    rows = body_elems // 128

    # Tiny inputs: pallas_call launch/pipeline overhead dwarfs the work.
    if (use_fastpath and num_head * n_elems * itemsize <= _FASTPATH_BYTES) or rows < 8:
        return _attention_loss_jnp(heads)

    flats = [jnp.ravel(h) for h in heads]            # free reshape for contiguous data

    # --- tail (< 128 elements/head): one line of jnp instead of padding copies ---
    tail_sum = jnp.float32(0.0)
    if body_elems != n_elems:
        tails = jnp.stack([f[body_elems:] for f in flats]).astype(jnp.float32)
        tmean = jnp.mean(tails, axis=0, keepdims=True)
        tail_sum = jnp.float32(num_head) * jnp.sum((tails - tmean) ** 2)

    # --- body: lane-dense (rows, 128) view per head, HBM dtype preserved ---
    if body_elems == n_elems:
        xs = [f.reshape(rows, 128) for f in flats]    # free (bitcast) reshape
    else:
        # TODO(synk): for n_elems % 128 != 0 the prefix slice may cost one HBM
        # copy per head; a zero-copy path would need manual (pl.ANY) DMA with a
        # ragged last transfer.
        xs = [f[:body_elems].reshape(rows, 128) for f in flats]

    tile, num_splits, tps = _pick_tiling(rows, num_head, itemsize, max_tile_rows)
    covered_rows = num_splits * tps * tile
    may_need_mask = covered_rows != rows
    last_block = _cdiv(rows, tile) - 1

    kernel = functools.partial(
        _attention_loss_kernel,
        num_head=num_head, rows=rows, tile=tile,
        tiles_per_split=tps, may_need_mask=may_need_mask)

    def in_map(c, r):
        blk = c * tps + r
        if may_need_mask:
            # Clamp any fully-out-of-range tile (possible when the rectangular
            # grid over-covers); its contribution is masked to zero in-kernel.
            blk = jnp.minimum(blk, last_block)
        return (blk, 0)

    grid_spec = pltpu.PrefetchScalarGridSpec(
        num_scalar_prefetch=0,
        grid=(num_splits, tps),
        in_specs=[pl.BlockSpec((tile, 128), in_map) for _ in range(num_head)],
        out_specs=pl.BlockSpec((1, 8, 128), lambda c, r: (c, 0, 0)),
        scratch_shapes=[pltpu.VMEM((8, 128), jnp.float32)],
    )

    partials = pl.pallas_call(
        kernel,
        out_shape=jax.ShapeDtypeStruct((num_splits, 8, 128), jnp.float32),
        grid_spec=grid_spec,
        compiler_params=pltpu.CompilerParams(
            dimension_semantics=("parallel", "arbitrary"),
            vmem_limit_bytes=_VMEM_LIMIT,
        ),
    )(*xs)

    total = jnp.maximum(jnp.sum(partials) + tail_sum, jnp.float32(0.0))
    mse_sum = total / jnp.float32(n_elems)            # pooled sum of per-pair means
    return jnp.float32(count) / (mse_sum + jnp.float32(EPS))


def attention_loss_ref(heads):
    """Pure-JAX reference mirroring the PyTorch module (explicit pairwise MSE)."""
    num_head = len(heads)
    if num_head <= 1:
        return jnp.float32(0.0)
    loss = jnp.float32(0.0)
    count = 0
    for i in range(num_head - 1):
        for j in range(i + 1, num_head):
            loss = loss + jnp.mean(
                (heads[i].astype(jnp.float32) - heads[j].astype(jnp.float32)) ** 2)
            count += 1
    return jnp.float32(count) / (loss + jnp.float32(EPS))


if __name__ == "__main__":
    keys = jax.random.split(jax.random.PRNGKey(0), 12)

    # 1) Nominal attention-map shapes, forced through the Pallas path.
    num_head = 4
    heads = [jax.random.normal(keys[i], (2, 4, 16, 16), dtype=jnp.float32)
             for i in range(num_head)]
    out = jax.block_until_ready(attention_loss(heads, use_fastpath=False))
    ref = jax.block_until_ready(attention_loss_ref(heads))
    np.testing.assert_allclose(np.asarray(out), np.asarray(ref), rtol=1e-4, atol=1e-6)

    # 2) Small-input fast path (pure jnp) agrees.
    out_fp = jax.block_until_ready(attention_loss(heads))
    np.testing.assert_allclose(np.asarray(out_fp), np.asarray(ref), rtol=1e-4, atol=1e-6)

    # 3) Tiled + masked + dual-core-split path (forced small tile cap):
    #    3 heads of (2,5,32,32) -> rows=80, tile=32 -> 3 live tiles over a (2,2) grid.
    heads2 = [jax.random.normal(keys[4 + i], (2, 5, 32, 32), dtype=jnp.float32)
              for i in range(3)]
    out2 = jax.block_until_ready(
        attention_loss(heads2, max_tile_rows=32, use_fastpath=False))
    ref2 = jax.block_until_ready(attention_loss_ref(heads2))
    np.testing.assert_allclose(np.asarray(out2), np.asarray(ref2), rtol=1e-4, atol=1e-6)

    # 4) Non-multiple-of-128 size: <128-element tail handled in jnp (no padding).
    heads3 = [jax.random.normal(keys[7 + i], (2, 4, 17, 17), dtype=jnp.float32)
              for i in range(3)]
    out3 = jax.block_until_ready(attention_loss(heads3, use_fastpath=False))
    ref3 = jax.block_until_ready(attention_loss_ref(heads3))
    np.testing.assert_allclose(np.asarray(out3), np.asarray(ref3), rtol=1e-4, atol=1e-6)

    # 5) Nearly-identical heads: the centered form stays accurate (no cancellation).
    base = 5.0 * jax.random.normal(keys[10], (2, 4, 16, 16), dtype=jnp.float32)
    heads4 = [base + 1e-2 * jax.random.normal(keys[i], base.shape, dtype=jnp.float32)
              for i in range(3)]
    out4 = jax.block_until_ready(attention_loss(heads4, use_fastpath=False))
    ref4 = jax.block_until_ready(attention_loss_ref(heads4))
    np.testing.assert_allclose(np.asarray(out4), np.asarray(ref4), rtol=1e-3, atol=0)

    print("KERNEL_OK")
</pallas_src>

<mosaic_0001>
module attributes {stable_mosaic.version = 11 : i64} {
  func.func @_attention_loss_kernel(%arg0: i32, %arg1: i32, %arg2: memref<16x128xf32, #tpu.memory_space<vmem>>, %arg3: memref<16x128xf32, #tpu.memory_space<vmem>>, %arg4: memref<16x128xf32, #tpu.memory_space<vmem>>, %arg5: memref<16x128xf32, #tpu.memory_space<vmem>>, %arg6: memref<1x8x128xf32, #tpu.memory_space<vmem>>, %arg7: memref<8x128xf32, #tpu.memory_space<vmem>>) attributes {dimension_semantics = [#tpu.dimension_semantics<parallel>, #tpu.dimension_semantics<arbitrary>], iteration_bounds = array<i64: 1, 1>, scalar_prefetch = 0 : i64, scratch_operands = 1 : i64, tpu.core_type = #tpu.core_type<tc>, window_params = [{transform_indices = @transform_0, window_bounds = array<i64: 16, 128>}, {transform_indices = @transform_1, window_bounds = array<i64: 16, 128>}, {transform_indices = @transform_2, window_bounds = array<i64: 16, 128>}, {transform_indices = @transform_3, window_bounds = array<i64: 16, 128>}, {transform_indices = @transform_4, window_bounds = array<i64: 1, 8, 128>}]} {
    %c0_i32 = arith.constant 0 : i32
    %0 = arith.cmpi eq, %arg1, %c0_i32 : i32
    %1 = arith.extui %0 : i1 to i32
    %c0_i32_0 = arith.constant 0 : i32
    %2 = arith.cmpi ne, %1, %c0_i32_0 : i32
    scf.if %2 {
      %cst_23 = arith.constant 0.000000e+00 : f32
      %38 = vector.broadcast %cst_23 : f32 to vector<8x128xf32>
      %c0_24 = arith.constant 0 : index
      %c0_25 = arith.constant 0 : index
      %39 = vector.load %arg7[%c0_24, %c0_25] : memref<8x128xf32, #tpu.memory_space<vmem>>, vector<8x128xf32>
      tpu.vector_store %arg7[%c0_24, %c0_25], %38 {strides = array<i32>} : memref<8x128xf32, #tpu.memory_space<vmem>>, vector<8x128xf32>,
    } else {
    }
    %c0 = arith.constant 0 : index
    %c0_1 = arith.constant 0 : index
    %3 = vector.load %arg2[%c0, %c0_1] : memref<16x128xf32, #tpu.memory_space<vmem>>, vector<16x128xf32>
    %c0_2 = arith.constant 0 : index
    %c0_3 = arith.constant 0 : index
    %4 = vector.load %arg3[%c0_2, %c0_3] : memref<16x128xf32, #tpu.memory_space<vmem>>, vector<16x128xf32>
    %5 = arith.addf %3, %4 : vector<16x128xf32>
    %c0_4 = arith.constant 0 : index
    %c0_5 = arith.constant 0 : index
    %6 = vector.load %arg4[%c0_4, %c0_5] : memref<16x128xf32, #tpu.memory_space<vmem>>, vector<16x128xf32>
    %7 = arith.addf %5, %6 : vector<16x128xf32>
    %c0_6 = arith.constant 0 : index
    %c0_7 = arith.constant 0 : index
    %8 = vector.load %arg5[%c0_6, %c0_7] : memref<16x128xf32, #tpu.memory_space<vmem>>, vector<16x128xf32>
    %9 = arith.addf %7, %8 : vector<16x128xf32>
    %cst = arith.constant 2.500000e-01 : f32
    %10 = vector.broadcast %cst : f32 to vector<16x128xf32>
    %11 = arith.mulf %9, %10 : vector<16x128xf32>
    %c0_8 = arith.constant 0 : index
    %c0_9 = arith.constant 0 : index
    %12 = vector.load %arg2[%c0_8, %c0_9] : memref<16x128xf32, #tpu.memory_space<vmem>>, vector<16x128xf32>
    %13 = arith.subf %12, %11 : vector<16x128xf32>
    %14 = arith.mulf %13, %13 : vector<16x128xf32>
    %c0_10 = arith.constant 0 : index
    %c0_11 = arith.constant 0 : index
    %15 = vector.load %arg3[%c0_10, %c0_11] : memref<16x128xf32, #tpu.memory_space<vmem>>, vector<16x128xf32>
    %16 = arith.subf %15, %11 : vector<16x128xf32>
    %17 = arith.mulf %16, %16 : vector<16x128xf32>
    %18 = arith.addf %14, %17 : vector<16x128xf32>
    %c0_12 = arith.constant 0 : index
    %c0_13 = arith.constant 0 : index
    %19 = vector.load %arg4[%c0_12, %c0_13] : memref<16x128xf32, #tpu.memory_space<vmem>>, vector<16x128xf32>
    %20 = arith.subf %19, %11 : vector<16x128xf32>
    %21 = arith.mulf %20, %20 : vector<16x128xf32>
    %22 = arith.addf %18, %21 : vector<16x128xf32>
    %c0_14 = arith.constant 0 : index
    %c0_15 = arith.constant 0 : index
    %23 = vector.load %arg5[%c0_14, %c0_15] : memref<16x128xf32, #tpu.memory_space<vmem>>, vector<16x128xf32>
    %24 = arith.subf %23, %11 : vector<16x128xf32>
    %25 = arith.mulf %24, %24 : vector<16x128xf32>
    %26 = arith.addf %22, %25 : vector<16x128xf32>
    %cst_16 = arith.constant 4.000000e+00 : f32
    %27 = vector.broadcast %cst_16 : f32 to vector<16x128xf32>
    %28 = arith.mulf %27, %26 : vector<16x128xf32>
    %c0_17 = arith.constant 0 : index
    %c0_18 = arith.constant 0 : index
    %29 = vector.load %arg7[%c0_17, %c0_18] : memref<8x128xf32, #tpu.memory_space<vmem>>, vector<8x128xf32>
    %30 = vector.extract_strided_slice %28 {offsets = [0, 0], sizes = [8, 128], strides = [1, 1]} : vector<16x128xf32> to vector<8x128xf32>
    %31 = vector.extract_strided_slice %28 {offsets = [8, 0], sizes = [8, 128], strides = [1, 1]} : vector<16x128xf32> to vector<8x128xf32>
    %32 = arith.addf %30, %31 : vector<8x128xf32>
    %33 = arith.addf %29, %32 : vector<8x128xf32>
    %c0_19 = arith.constant 0 : index
    %c0_20 = arith.constant 0 : index
    %34 = vector.load %arg7[%c0_19, %c0_20] : memref<8x128xf32, #tpu.memory_space<vmem>>, vector<8x128xf32>
    tpu.vector_store %arg7[%c0_19, %c0_20], %33 {strides = array<i32>} : memref<8x128xf32, #tpu.memory_space<vmem>>, vector<8x128xf32>,
    %c0_i32_21 = arith.constant 0 : i32
    %35 = arith.cmpi eq, %arg1, %c0_i32_21 : i32
    %36 = arith.extui %35 : i1 to i32
    %c0_i32_22 = arith.constant 0 : i32
    %37 = arith.cmpi ne, %36, %c0_i32_22 : i32
    scf.if %37 {
      %c0_23 = arith.constant 0 : index
      %c0_24 = arith.constant 0 : index
      %38 = vector.load %arg7[%c0_23, %c0_24] : memref<8x128xf32, #tpu.memory_space<vmem>>, vector<8x128xf32>
      %c0_25 = arith.constant 0 : index
      %c0_26 = arith.constant 0 : index
      %c0_27 = arith.constant 0 : index
      %39 = vector.load %arg6[%c0_25, %c0_26, %c0_27] : memref<1x8x128xf32, #tpu.memory_space<vmem>>, vector<1x8x128xf32>
      %40 = vector.shape_cast %39 : vector<1x8x128xf32> to vector<8x128xf32>
      %41 = vector.shape_cast %38 : vector<8x128xf32> to vector<1x8x128xf32>
      tpu.vector_store %arg6[%c0_25, %c0_26, %c0_27], %41 {strides = array<i32>} : memref<1x8x128xf32, #tpu.memory_space<vmem>>, vector<1x8x128xf32>,
    } else {
    }
    return
  }
  func.func @transform_0(%arg0: i32, %arg1: i32) -> (i32, i32) {
    %c1_i32 = arith.constant 1 : i32
    %0 = arith.muli %arg0, %c1_i32 : i32
    %1 = arith.addi %0, %arg1 : i32
    %c0_i32 = arith.constant 0 : i32
    %c0_i32_0 = arith.constant 0 : i32
    return %1, %c0_i32 : i32, i32
  }
  func.func @transform_1(%arg0: i32, %arg1: i32) -> (i32, i32) {
    %c1_i32 = arith.constant 1 : i32
    %0 = arith.muli %arg0, %c1_i32 : i32
    %1 = arith.addi %0, %arg1 : i32
    %c0_i32 = arith.constant 0 : i32
    %c0_i32_0 = arith.constant 0 : i32
    return %1, %c0_i32 : i32, i32
  }
  func.func @transform_2(%arg0: i32, %arg1: i32) -> (i32, i32) {
    %c1_i32 = arith.constant 1 : i32
    %0 = arith.muli %arg0, %c1_i32 : i32
    %1 = arith.addi %0, %arg1 : i32
    %c0_i32 = arith.constant 0 : i32
    %c0_i32_0 = arith.constant 0 : i32
    return %1, %c0_i32 : i32, i32
  }
  func.func @transform_3(%arg0: i32, %arg1: i32) -> (i32, i32) {
    %c1_i32 = arith.constant 1 : i32
    %0 = arith.muli %arg0, %c1_i32 : i32
    %1 = arith.addi %0, %arg1 : i32
    %c0_i32 = arith.constant 0 : i32
    %c0_i32_0 = arith.constant 0 : i32
    return %1, %c0_i32 : i32, i32
  }
  func.func @transform_4(%arg0: i32, %arg1: i32) -> (i32, i32, i32) {
    %c0_i32 = arith.constant 0 : i32
    %c0_i32_0 = arith.constant 0 : i32
    %c0_i32_1 = arith.constant 0 : i32
    return %arg0, %c0_i32, %c0_i32_0 : i32, i32, i32
  }
}

</mosaic_0001>

<llo_original>
// kernel: tpu_custom_call.1
$region0: #{tpu_custom_call.1}
  #allocation0 [shape = 'u32[]', space=smem, size = 0x4, offset = 0x4, fixed_abs, tag = 'smem constant byte address 0x4 - core index']
  #allocation1 [shape = 'u32[144,128]{1,0:T(1,128)}', space=vmem, size = 0x12000, scoped, tag = 'internal scratch']
  #allocation2 [shape = 'f32[8,128]{1,0:T(8,128)}', space=vmem, size = 0x1000, scoped, tag = 'scratch operand']
  %s0 = inlined_call_operand.hbm [shape: f32[16,128], index: 0, kind: input, shape index: {}]
  %s1 = inlined_call_operand.hbm [shape: f32[16,128], index: 1, kind: input, shape index: {}]
  %s2 = inlined_call_operand.hbm [shape: f32[16,128], index: 2, kind: input, shape index: {}]
  %s3 = inlined_call_operand.hbm [shape: f32[16,128], index: 3, kind: input, shape index: {}]
  %s4 = inlined_call_operand.hbm [shape: f32[1,8,128], index: 4, kind: output, shape index: {}]
  %s5 = sld [smem:[#allocation0]]
  $region50: #{tpu_custom_call.1} parent=0
    _
  %s7 = ssub.s32 1, %s5
  %s8 = scalar_select 0, %s7, %s5
  $region1: #{tpu_custom_call.1} parent=0
    #allocation3 [shape = 'u8[8192]{0}', space=vmem, size = 0x2000, scoped, tag = 'input window, operand 0, single buffered']
    #allocation4 [shape = 's32[1]{0}', space=sflag, size = 0x4, scoped, tag = 'scoped memory for tpu_custom_call.1']
    #allocation5 [shape = 's32[1]{0}', space=sflag, size = 0x4, scoped, tag = 'scoped memory for tpu_custom_call.1']
    #allocation6 [shape = 'u8[8192]{0}', space=vmem, size = 0x2000, scoped, tag = 'input window, operand 1, single buffered']
    #allocation7 [shape = 's32[1]{0}', space=sflag, size = 0x4, scoped, tag = 'scoped memory for tpu_custom_call.1']
    #allocation8 [shape = 'u8[8192]{0}', space=vmem, size = 0x2000, scoped, tag = 'input window, operand 2, single buffered']
    #allocation9 [shape = 'u8[8192]{0}', space=vmem, size = 0x2000, scoped, tag = 'input window, operand 3, single buffered']
    #allocation10 [shape = 's32[1]{0}', space=sflag, size = 0x4, scoped, tag = 'scoped memory for tpu_custom_call.1']
    #allocation11 [shape = 'u8[4096]{0}', space=vmem, size = 0x1000, scoped, tag = 'output window, operand 0, single buffered']
    %9 = vsyncpa [#allocation4], 0
    %10 = vsyncpa [#allocation7], 0
    %11 = vsyncpa [#allocation10], 0
    %12 = vsyncpa [#allocation5], 0
    // Predicated region
    $region2: #{tpu_custom_call.1} parent=1 // pred_check
      _
    $region3: #{tpu_custom_call.1} parent=1 // pred_check_branch
      %14 = sbr.rel (0) target = $region5
    $region4: #{tpu_custom_call.1} parent=1 // pred_region
      %s15 = sadd.s32 0, 0
      %s16 = smul.u32 2, %s15
      %s18 = ssub.s32 256, 256
      %19 = vsyncadd [#allocation4], %s18
      %s20 = smul.addr %s16, 128
      %s21 = scalar_lea.hbm %s0, %s20
      %s22 = sshll.u32 [#allocation3], 4
      %s23 = int_to_ptr.vmem [resolvable:$true] %s22
      %28 = dma.hbm_to_vmem [thread:$0]  %s21, 256, %s23, [#allocation4], 128, 128, 8
    $region5: #{tpu_custom_call.1} parent=1 // pred_fallthru
      _
    // Predicated region
    $region6: #{tpu_custom_call.1} parent=1 // pred_check
      _
    $region7: #{tpu_custom_call.1} parent=1 // pred_check_branch
      %30 = sbr.rel (0) target = $region9
    $region8: #{tpu_custom_call.1} parent=1 // pred_region
      %s31 = sadd.s32 0, 0
      %s32 = smul.u32 2, %s31
      %s34 = ssub.s32 256, 256
      %35 = vsyncadd [#allocation7], %s34
      %s36 = smul.addr %s32, 128
      %s37 = scalar_lea.hbm %s1, %s36
      %s38 = sshll.u32 [#allocation6], 4
      %s39 = int_to_ptr.vmem [resolvable:$true] %s38
      %44 = dma.hbm_to_vmem [thread:$0]  %s37, 256, %s39, [#allocation7], 128, 128, 8
    $region9: #{tpu_custom_call.1} parent=1 // pred_fallthru
      _
    // Predicated region
    $region10: #{tpu_custom_call.1} parent=1 // pred_check
      _
    $region11: #{tpu_custom_call.1} parent=1 // pred_check_branch
      %46 = sbr.rel (0) target = $region13
    $region12: #{tpu_custom_call.1} parent=1 // pred_region
      %s47 = sadd.s32 0, 0
      %s48 = smul.u32 2, %s47
      %s50 = ssub.s32 256, 256
      %51 = vsyncadd [#allocation7], %s50
      %s52 = smul.addr %s48, 128
      %s53 = scalar_lea.hbm %s2, %s52
      %s54 = sshll.u32 [#allocation8], 4
      %s55 = int_to_ptr.vmem [resolvable:$true] %s54
      %60 = dma.hbm_to_vmem [thread:$0]  %s53, 256, %s55, [#allocation7], 128, 128, 8
    $region13: #{tpu_custom_call.1} parent=1 // pred_fallthru
      _
    // Predicated region
    $region14: #{tpu_custom_call.1} parent=1 // pred_check
      _
    $region15: #{tpu_custom_call.1} parent=1 // pred_check_branch
      %62 = sbr.rel (0) target = $region17
    $region16: #{tpu_custom_call.1} parent=1 // pred_region
      %s63 = sadd.s32 0, 0
      %s64 = smul.u32 2, %s63
      %s66 = ssub.s32 256, 256
      %67 = vsyncadd [#allocation10], %s66
      %s68 = smul.addr %s64, 128
      %s69 = scalar_lea.hbm %s3, %s68
      %s70 = sshll.u32 [#allocation9], 4
      %s71 = int_to_ptr.vmem [resolvable:$true] %s70
      %76 = dma.hbm_to_vmem [thread:$0]  %s69, 256, %s71, [#allocation10], 128, 128, 8
    $region17: #{tpu_custom_call.1} parent=1 // pred_fallthru
      _
    // Predicated region
    $region18: #{tpu_custom_call.1} parent=1 // pred_check
      _
    $region19: #{tpu_custom_call.1} parent=1 // pred_check_branch
      %78 = sbr.rel (0) target = $region21
    $region20: #{tpu_custom_call.1} parent=1 // pred_region
      %79 = dma.done [#allocation4], 256
    $region21: #{tpu_custom_call.1} parent=1 // pred_fallthru
      _
    // Predicated region
    $region22: #{tpu_custom_call.1} parent=1 // pred_check
      _
    $region23: #{tpu_custom_call.1} parent=1 // pred_check_branch
      %81 = sbr.rel (0) target = $region25
    $region24: #{tpu_custom_call.1} parent=1 // pred_region
      %82 = dma.done [#allocation7], 256
    $region25: #{tpu_custom_call.1} parent=1 // pred_fallthru
      _
    // Predicated region
    $region26: #{tpu_custom_call.1} parent=1 // pred_check
      _
    $region27: #{tpu_custom_call.1} parent=1 // pred_check_branch
      %84 = sbr.rel (0) target = $region29
    $region28: #{tpu_custom_call.1} parent=1 // pred_region
      %85 = dma.done [#allocation7], 256
    $region29: #{tpu_custom_call.1} parent=1 // pred_fallthru
      _
    // Predicated region
    $region30: #{tpu_custom_call.1} parent=1 // pred_check
      _
    $region31: #{tpu_custom_call.1} parent=1 // pred_check_branch
      %87 = sbr.rel (0) target = $region33
    $region32: #{tpu_custom_call.1} parent=1 // pred_region
      %88 = dma.done [#allocation10], 256
    $region33: #{tpu_custom_call.1} parent=1 // pred_fallthru
      _
    %s89 = sadd.s32 0, 0
    %s90 = smul.u32 2, %s89
    %s91 = sadd.s32 0, 0
    %s92 = smul.u32 2, %s91
    %s93 = sadd.s32 0, 0
    %s94 = smul.u32 2, %s93
    %s95 = sadd.s32 0, 0
    %s96 = smul.u32 2, %s95
    %p97 = scmp.eq.s32.totalorder 0, 0
    // Predicated region
    $region34: #{tpu_custom_call.1} parent=1 // pred_check
      %p98 = pneg %p97
    $region35: #{tpu_custom_call.1} parent=1 // pred_check_branch
      %100 = sbr.rel (%p98) target = $region37
    $region36: #{tpu_custom_call.1} parent=1 // pred_region
      %101 = vst [vmem:[#allocation2] sm:$0xff] 0.0
    $region37: #{tpu_custom_call.1} parent=1 // pred_fallthru
      _
    %v102 = vld [vmem:[#allocation3] sm:$0xff]
    %v103 = vld [vmem:[#allocation3 + $0x8] sm:$0xff]
    %v104 = vld [vmem:[#allocation6] sm:$0xff]
    %v105 = vld [vmem:[#allocation6 + $0x8] sm:$0xff]
    %v106 = vadd.f32 %v102, %v104
    %v107 = vadd.f32 %v103, %v105
    %v108 = vld [vmem:[#allocation8] sm:$0xff]
    %v109 = vld [vmem:[#allocation8 + $0x8] sm:$0xff]
    %v110 = vadd.f32 %v106, %v108
    %v111 = vadd.f32 %v107, %v109
    %v112 = vld [vmem:[#allocation9] sm:$0xff]
    %v113 = vld [vmem:[#allocation9 + $0x8] sm:$0xff]
    %v114 = vadd.f32 %v110, %v112
    %v115 = vadd.f32 %v111, %v113
    %v116 = vmul.f32 %v114, 0.25
    %v117 = vmul.f32 %v115, 0.25
    %v118 = vsub.f32 %v102, %v116
    %v119 = vsub.f32 %v103, %v117
    %v120 = vmul.f32 %v118, %v118
    %v121 = vmul.f32 %v119, %v119
    %v122 = vsub.f32 %v104, %v116
    %v123 = vsub.f32 %v105, %v117
    %v124 = vmul.f32 %v122, %v122
    %v125 = vmul.f32 %v123, %v123
    %v126 = vadd.f32 %v120, %v124
    %v127 = vadd.f32 %v121, %v125
    %v128 = vsub.f32 %v108, %v116
    %v129 = vsub.f32 %v109, %v117
    %v130 = vmul.f32 %v128, %v128
    %v131 = vmul.f32 %v129, %v129
    %v132 = vadd.f32 %v126, %v130
    %v133 = vadd.f32 %v127, %v131
    %v134 = vsub.f32 %v112, %v116
    %v135 = vsub.f32 %v113, %v117
    %v136 = vmul.f32 %v134, %v134
    %v137 = vmul.f32 %v135, %v135
    %v138 = vadd.f32 %v132, %v136
    %v139 = vadd.f32 %v133, %v137
    %v140 = vmul.f32 %v138, 4.0
    %v141 = vmul.f32 %v139, 4.0
    %v142 = vld [vmem:[#allocation2] sm:$0xff]
    %v143 = vadd.f32 %v140, %v141
    %v144 = vadd.f32 %v142, %v143
    %145 = vst [vmem:[#allocation2] sm:$0xff] %v144
    // Predicated region
    $region38: #{tpu_custom_call.1} parent=1 // pred_check
      %p146 = pneg %p97
    $region39: #{tpu_custom_call.1} parent=1 // pred_check_branch
      %148 = sbr.rel (%p146) target = $region41
    $region40: #{tpu_custom_call.1} parent=1 // pred_region
      %v149 = vld [vmem:[#allocation2] sm:$0xff]
      %150 = vst [vmem:[#allocation11] sm:$0xff] %v149
    $region41: #{tpu_custom_call.1} parent=1 // pred_fallthru
      _
    // Predicated region
    $region42: #{tpu_custom_call.1} parent=1 // pred_check
      _
    $region43: #{tpu_custom_call.1} parent=1 // pred_check_branch
      %152 = sbr.rel (0) target = $region45
    $region44: #{tpu_custom_call.1} parent=1 // pred_region
      %s154 = ssub.s32 128, 128
      %155 = vsyncadd [#allocation5], %s154
      %s157 = sshll.u32 [#allocation11], 4
      %s158 = int_to_ptr.vmem [resolvable:$true] %s157
      %160 = dma.vmem_to_hbm [thread:$0]  %s158, 128, %s4, [#allocation5]
    $region45: #{tpu_custom_call.1} parent=1 // pred_fallthru
      _
    // Predicated region
    $region46: #{tpu_custom_call.1} parent=1 // pred_check
      _
    $region47: #{tpu_custom_call.1} parent=1 // pred_check_branch
      %162 = sbr.rel (0) target = $region49
    $region48: #{tpu_custom_call.1} parent=1 // pred_region
      %163 = dma.done [#allocation5], 128
    $region49: #{tpu_custom_call.1} parent=1 // pred_fallthru
      _
    %164 = vsyncpa [#allocation4], 1
    %165 = vsyncpa [#allocation7], 1
    %166 = vsyncpa [#allocation10], 1
    %167 = vsyncpa [#allocation5], 1

</llo_original>
